<compile_context>
chip_gen: v7x
topology: tpu7x:2x2x1
jax: 0.10.0
libtpu: 0.0.40
codegen_flags: <defaults>
</compile_context>

<pallas_src>
import jax
import jax.numpy as jnp
from jax.experimental import pallas as pl
from jax.experimental.pallas import tpu as pltpu


def _linear_kernel(x_ref, w_ref, b_ref, o_ref):
    # x_ref: [IN, TB] f32 VMEM (batch on lanes)
    # w_ref: [IN]     f32 SMEM
    # b_ref: [OUT=1]  f32 SMEM
    # o_ref: [OUT, TB] f32 VMEM
    acc = jnp.zeros(o_ref.shape, jnp.float32) + b_ref[0]
    for k in range(x_ref.shape[0]):          # IN = 3, static unroll -> 3 VPU mul-adds
        acc = acc + w_ref[k] * x_ref[k:k + 1, :]
    o_ref[...] = acc.astype(o_ref.dtype)


def linear_forward(x, weight, bias, *, tb=2048):
    """Pallas equivalent of nn.Linear(3, 1).forward.

    x:      [B, IN]   float32
    weight: [OUT, IN] (torch convention), OUT == 1
    bias:   [OUT]
    returns [B, OUT]

    NOTE: for tiny B (a handful of rows) a plain XLA x @ W.T + b is faster
    than any kernel launch; this kernel is shaped for large-B streaming.
    """
    B, IN = x.shape
    OUT, IN_w = weight.shape
    assert IN_w == IN and OUT == 1

    # Batch on the lane axis (layout plumbing, done in plain JAX).
    x_t = x.T                                            # [IN, B]

    # Lane tile: multiple of 128, clamped so tiny batches use one tile.
    tb = max(128, min(tb, pl.cdiv(B, 128) * 128))
    assert tb % 128 == 0
    Bp = pl.cdiv(B, tb) * tb
    if Bp != B:
        x_t = jnp.pad(x_t, ((0, 0), (0, Bp - B)))        # zero tail, sliced off below

    w_vec = weight.reshape(IN).astype(jnp.float32)       # 3 scalars -> SMEM
    b_vec = bias.reshape(OUT).astype(jnp.float32)        # 1 scalar  -> SMEM

    out = pl.pallas_call(
        _linear_kernel,
        out_shape=jax.ShapeDtypeStruct((OUT, Bp), x.dtype),
        grid_spec=pl.GridSpec(
            grid=(Bp // tb,),
            in_specs=[
                pl.BlockSpec((IN, tb), lambda i: (0, i)),
                pl.BlockSpec(memory_space=pltpu.MemorySpace.SMEM),
                pl.BlockSpec(memory_space=pltpu.MemorySpace.SMEM),
            ],
            out_specs=pl.BlockSpec((OUT, tb), lambda i: (0, i)),
        ),
        compiler_params=pltpu.CompilerParams(
            dimension_semantics=("parallel",)),
    )(x_t, w_vec, b_vec)

    return out[:, :B].T                                  # [B, OUT]


if __name__ == "__main__":
    key = jax.random.PRNGKey(0)
    kx, kw, kb = jax.random.split(key, 3)

    B, IN, OUT = 200, 3, 1                 # B not a multiple of 128 -> exercises tail pad
    x = jax.random.normal(kx, (B, IN), dtype=jnp.float32)

    # Deterministic parameters matching nn.Linear(3, 1) shapes:
    # weight [1, 3], bias [1] (uniform in +/- 1/sqrt(fan_in), like torch default).
    bound = 1.0 / jnp.sqrt(jnp.float32(IN))
    weight = jax.random.uniform(kw, (OUT, IN), minval=-bound, maxval=bound,
                                dtype=jnp.float32)
    bias = jax.random.uniform(kb, (OUT,), minval=-bound, maxval=bound,
                              dtype=jnp.float32)

    # Small tile so the demo runs a 2-step grid over the batch axis.
    y = linear_forward(x, weight, bias, tb=128)
    y = jax.block_until_ready(y)

    # Reference check against plain JAX (same math as torch's x @ W^T + b).
    y_ref = x @ weight.T + bias
    assert y.shape == (B, OUT)
    assert jnp.allclose(y, y_ref, atol=1e-5, rtol=1e-5)

    print("KERNEL_OK")
</pallas_src>

<mosaic_0001>
module attributes {stable_mosaic.version = 11 : i64} {
  func.func @_linear_kernel(%arg0: i32, %arg1: memref<3x128xf32, #tpu.memory_space<vmem>>, %arg2: memref<3xf32, #tpu.memory_space<smem>>, %arg3: memref<1xf32, #tpu.memory_space<smem>>, %arg4: memref<1x128xf32, #tpu.memory_space<vmem>>) attributes {dimension_semantics = [#tpu.dimension_semantics<parallel>], iteration_bounds = array<i64: 2>, scalar_prefetch = 0 : i64, scratch_operands = 0 : i64, tpu.core_type = #tpu.core_type<tc>, window_params = [{transform_indices = @transform_0, window_bounds = array<i64: 3, 128>}, {transform_indices = @transform_1, window_bounds = array<i64: 3>}, {transform_indices = @transform_2, window_bounds = array<i64: 1>}, {transform_indices = @transform_3, window_bounds = array<i64: 1, 128>}]} {
    %cst = arith.constant 0.000000e+00 : f32
    %0 = vector.broadcast %cst : f32 to vector<1x128xf32>
    %c0 = arith.constant 0 : index
    %1 = memref.load %arg3[%c0] : memref<1xf32, #tpu.memory_space<smem>>
    %2 = vector.broadcast %1 : f32 to vector<1x128xf32>
    %3 = arith.addf %0, %2 : vector<1x128xf32>
    %c0_0 = arith.constant 0 : index
    %4 = memref.load %arg2[%c0_0] : memref<3xf32, #tpu.memory_space<smem>>
    %c0_1 = arith.constant 0 : index
    %c0_2 = arith.constant 0 : index
    %5 = vector.load %arg1[%c0_1, %c0_2] : memref<3x128xf32, #tpu.memory_space<vmem>>, vector<1x128xf32>
    %6 = vector.broadcast %4 : f32 to vector<1x128xf32>
    %7 = arith.mulf %6, %5 : vector<1x128xf32>
    %8 = arith.addf %3, %7 : vector<1x128xf32>
    %c1 = arith.constant 1 : index
    %9 = memref.load %arg2[%c1] : memref<3xf32, #tpu.memory_space<smem>>
    %c1_3 = arith.constant 1 : index
    %c0_4 = arith.constant 0 : index
    %10 = vector.load %arg1[%c1_3, %c0_4] : memref<3x128xf32, #tpu.memory_space<vmem>>, vector<1x128xf32>
    %11 = vector.broadcast %9 : f32 to vector<1x128xf32>
    %12 = arith.mulf %11, %10 : vector<1x128xf32>
    %13 = arith.addf %8, %12 : vector<1x128xf32>
    %c2 = arith.constant 2 : index
    %14 = memref.load %arg2[%c2] : memref<3xf32, #tpu.memory_space<smem>>
    %c2_5 = arith.constant 2 : index
    %c0_6 = arith.constant 0 : index
    %15 = vector.load %arg1[%c2_5, %c0_6] : memref<3x128xf32, #tpu.memory_space<vmem>>, vector<1x128xf32>
    %16 = vector.broadcast %14 : f32 to vector<1x128xf32>
    %17 = arith.mulf %16, %15 : vector<1x128xf32>
    %18 = arith.addf %13, %17 : vector<1x128xf32>
    %c0_7 = arith.constant 0 : index
    %c0_8 = arith.constant 0 : index
    %19 = vector.load %arg4[%c0_7, %c0_8] : memref<1x128xf32, #tpu.memory_space<vmem>>, vector<1x128xf32>
    tpu.vector_store %arg4[%c0_7, %c0_8], %18 {strides = array<i32>} : memref<1x128xf32, #tpu.memory_space<vmem>>, vector<1x128xf32>,
    return
  }
  func.func @transform_0(%arg0: i32) -> (i32, i32) {
    %c0_i32 = arith.constant 0 : i32
    %c0_i32_0 = arith.constant 0 : i32
    return %c0_i32, %arg0 : i32, i32
  }
  func.func @transform_1(%arg0: i32) -> i32 {
    %c0_i32 = arith.constant 0 : i32
    %c0_i32_0 = arith.constant 0 : i32
    return %c0_i32 : i32
  }
  func.func @transform_2(%arg0: i32) -> i32 {
    %c0_i32 = arith.constant 0 : i32
    %c0_i32_0 = arith.constant 0 : i32
    return %c0_i32 : i32
  }
  func.func @transform_3(%arg0: i32) -> (i32, i32) {
    %c0_i32 = arith.constant 0 : i32
    %c0_i32_0 = arith.constant 0 : i32
    return %c0_i32, %arg0 : i32, i32
  }
}

</mosaic_0001>

<llo_original>
// kernel: tpu_custom_call.1
$region0: #{tpu_custom_call.1}
  #allocation0 [shape = 'u32[]', space=smem, size = 0x4, offset = 0x4, fixed_abs, tag = 'smem constant byte address 0x4 - core index']
  #allocation1 [shape = 'u32[144,128]{1,0:T(1,128)}', space=vmem, size = 0x12000, scoped, tag = 'internal scratch']
  #allocation2 [shape = 'f32[1]{0:T(128)S(6)}', space=smem, size = 0x200, scoped, tag = 'scoped memory for tpu_custom_call.1']
  %s0 = inlined_call_operand.hbm [shape: f32[3,256], index: 0, kind: input, shape index: {}]
  %s1 = inlined_call_operand.vmem [shape: f32[3], index: 1, kind: input, shape index: {}]
  %s2 = inlined_call_operand.<no memory space> [shape: f32[1], index: 2, kind: input, shape index: {}]
  %s3 = inlined_call_operand.hbm [shape: f32[1,256], index: 3, kind: output, shape index: {}]
  %s4 = sld [smem:[#allocation0]]
  $region53: #{tpu_custom_call.1} parent=0
    _
  %s6 = ssub.s32 1, %s4
  %s7 = scalar_select 0, %s6, %s4
  %8 = sst [smem:[#allocation2]] %s2
  $region1: #{tpu_custom_call.1} parent=0
    #allocation3 [shape = 'u8[4096]{0}', space=vmem, size = 0x1000, scoped, tag = 'input window, operand 0']
    #allocation4 [shape = 's32[2]{0}', space=sflag, size = 0x8, scoped, tag = 'scoped memory for tpu_custom_call.1']
    #allocation5 [shape = 's32[2]{0}', space=sflag, size = 0x8, scoped, tag = 'scoped memory for tpu_custom_call.1']
    #allocation6 [shape = 's32[2]{0}', space=sflag, size = 0x8, scoped, tag = 'scoped memory for tpu_custom_call.1']
    #allocation7 [shape = 'u8[512]{0}', space=smem, size = 0x200, scoped, tag = 'input window, operand 1, single buffered']
    #allocation8 [shape = 'u8[1024]{0}', space=vmem, size = 0x400, scoped, tag = 'output window, operand 0']
    %9 = vsyncpa [#allocation4], 0
    %s10 = scalar_lea.sflag [#allocation4], 1
    %11 = vsyncpa %s10, 0
    %12 = vsyncpa [#allocation6], 0
    %13 = vsyncpa [#allocation5], 0
    %s14 = scalar_lea.sflag [#allocation5], 1
    %15 = vsyncpa %s14, 0
    loop: start=0, step=1, limit=4
    $region2: #{tpu_custom_call.1} parent=1 // loop_pre_header
      _
    $region3: #{tpu_custom_call.1} parent=1 // loop_header
      %s17 = sphi 0, %s21
      %p18 = scmp.ge.s32.totalorder %s17, 4
      %s27 = sphi 0, %s29
      %s30 = sphi 0, %s27
      %s31 = sphi 0, %s30
      %s47 = sphi 0, %s31
      %s51 = sphi 0, %s51
      %s53 = sphi 0, %s51
      %s54 = sphi 0, %s53
      %s68 = sphi 0, %s54
      %s72 = sphi 0, %s72
      %s74 = sphi 0, %s72
      %s75 = sphi 0, %s74
      %s89 = sphi 0, %s75
      %s95 = sphi 0, %s97
      %s98 = sphi 0, %s95
      %s99 = sphi 0, %s98
      %s115 = sphi 0, %s99
    $region4: #{tpu_custom_call.1} parent=1 // loop_header_branch
      %20 = sbr.rel (%p18) target = $region8
    $region5: #{tpu_custom_call.1} parent=1 // loop_body
      %s22 = ssub.s32 %s17, 1
      %s23 = ssub.s32 %s17, 2
      %s24 = sadd.s32 %s17, 1
      %s25 = ssub.s32 %s17, %s24
      %p26 = scmp.eq.s32.totalorder %s25, 0
      %s28 = sadd.s32 %s27, 1
      %s29 = scalar_select %p26, %s27, %s28
      %p32 = pneg %p26
      %p33 = scmp.eq.s32.totalorder %s17, 1
      %p34 = por %p32, %p33
      %p35 = scmp.ne.s32.totalorder %s27, %s30
      %p36 = scmp.eq.s32.totalorder %s17, 0
      %p37 = por %p35, %p36
      %p38 = scmp.ne.s32.totalorder %s27, %s30
      %p39 = scmp.eq.s32.totalorder %s22, 1
      %p40 = por %p38, %p39
      %p41 = scmp.ne.s32.totalorder %s30, %s31
      %p42 = scmp.eq.s32.totalorder %s22, 0
      %p43 = por %p41, %p42
      %p44 = scmp.ne.s32.totalorder %s30, %s31
      %p45 = scmp.eq.s32.totalorder %s23, 1
      %p46 = por %p44, %p45
      %p48 = scmp.ne.s32.totalorder %s31, %s47
      %p49 = scmp.eq.s32.totalorder %s23, 0
      %p50 = por %p48, %p49
      %s52 = sadd.s32 %s51, 1
      %p55 = scmp.eq.s32.totalorder %s17, 1
      %p56 = scmp.ne.s32.totalorder %s51, %s53
      %p57 = scmp.eq.s32.totalorder %s17, 0
      %p58 = por %p56, %p57
      %p59 = scmp.ne.s32.totalorder %s51, %s53
      %p60 = scmp.eq.s32.totalorder %s22, 1
      %p61 = por %p59, %p60
      %p62 = scmp.ne.s32.totalorder %s53, %s54
      %p63 = scmp.eq.s32.totalorder %s22, 0
      %p64 = por %p62, %p63
      %p65 = scmp.ne.s32.totalorder %s53, %s54
      %p66 = scmp.eq.s32.totalorder %s23, 1
      %p67 = por %p65, %p66
      %p69 = scmp.ne.s32.totalorder %s54, %s68
      %p70 = scmp.eq.s32.totalorder %s23, 0
      %p71 = por %p69, %p70
      %s73 = sadd.s32 %s72, 1
      %p76 = scmp.eq.s32.totalorder %s17, 1
      %p77 = scmp.ne.s32.totalorder %s72, %s74
      %p78 = scmp.eq.s32.totalorder %s17, 0
      %p79 = por %p77, %p78
      %p80 = scmp.ne.s32.totalorder %s72, %s74
      %p81 = scmp.eq.s32.totalorder %s22, 1
      %p82 = por %p80, %p81
      %p83 = scmp.ne.s32.totalorder %s74, %s75
      %p84 = scmp.eq.s32.totalorder %s22, 0
      %p85 = por %p83, %p84
      %p86 = scmp.ne.s32.totalorder %s74, %s75
      %p87 = scmp.eq.s32.totalorder %s23, 1
      %p88 = por %p86, %p87
      %p90 = scmp.ne.s32.totalorder %s75, %s89
      %p91 = scmp.eq.s32.totalorder %s23, 0
      %p92 = por %p90, %p91
      %s93 = ssub.s32 %s17, %s24
      %p94 = scmp.eq.s32.totalorder %s93, 0
      %s96 = sadd.s32 %s95, 1
      %s97 = scalar_select %p94, %s95, %s96
      %p100 = pneg %p94
      %p101 = scmp.eq.s32.totalorder %s17, 1
      %p102 = por %p100, %p101
      %p103 = scmp.ne.s32.totalorder %s95, %s98
      %p104 = scmp.eq.s32.totalorder %s17, 0
      %p105 = por %p103, %p104
      %p106 = scmp.ne.s32.totalorder %s95, %s98
      %p107 = scmp.eq.s32.totalorder %s22, 1
      %p108 = por %p106, %p107
      %p109 = scmp.ne.s32.totalorder %s98, %s99
      %p110 = scmp.eq.s32.totalorder %s22, 0
      %p111 = por %p109, %p110
      %p112 = scmp.ne.s32.totalorder %s98, %s99
      %p113 = scmp.eq.s32.totalorder %s23, 1
      %p114 = por %p112, %p113
      %p116 = scmp.ne.s32.totalorder %s99, %s115
      %p117 = scmp.eq.s32.totalorder %s23, 0
      %p118 = por %p116, %p117
      %p119 = scmp.le.s32.totalorder 1, %s17
      %p120 = scmp.lt.s32.totalorder %s17, 3
      %p121 = pnand %p119, %p120
      %p122 = pneg %p121
      // Predicated region
      $region9: #{tpu_custom_call.1} parent=5 // pred_check
        _
      $region10: #{tpu_custom_call.1} parent=5 // pred_check_branch
        %124 = sbr.rel (%p121) target = $region12
      $region11: #{tpu_custom_call.1} parent=5 // pred_region
        %s125 = ssub.s32 %s17, 1
        // Predicated region
        $region13: #{tpu_custom_call.1} parent=11 // pred_check
          %p126 = pneg %p64
        $region14: #{tpu_custom_call.1} parent=11 // pred_check_branch
          %128 = sbr.rel (%p126) target = $region16
        $region15: #{tpu_custom_call.1} parent=11 // pred_region
          %s130 = ssub.s32 16, 16
          %131 = vsyncadd [#allocation6], %s130
          %s133 = sshll.u32 %s1, 4
          %s134 = int_to_ptr.vmem [resolvable:$true] %s133
          %136 = dma.vmem_to_smem %s134, 16, [#allocation7], [#allocation6]
        $region16: #{tpu_custom_call.1} parent=11 // pred_fallthru
          _
        // Predicated region
        $region17: #{tpu_custom_call.1} parent=11 // pred_check
          %p137 = pneg %p85
        $region18: #{tpu_custom_call.1} parent=11 // pred_check_branch
          %139 = sbr.rel (%p137) target = $region20
        $region19: #{tpu_custom_call.1} parent=11 // pred_region
          _
        $region20: #{tpu_custom_call.1} parent=11 // pred_fallthru
          _
      $region12: #{tpu_custom_call.1} parent=5 // pred_fallthru
        _
      %p140 = scmp.lt.s32.totalorder %s17, 2
      // Predicated region
      $region21: #{tpu_custom_call.1} parent=5 // pred_check
        %p141 = pneg %p140
      $region22: #{tpu_custom_call.1} parent=5 // pred_check_branch
        %143 = sbr.rel (%p141) target = $region24
      $region23: #{tpu_custom_call.1} parent=5 // pred_region
        // Predicated region
        $region25: #{tpu_custom_call.1} parent=23 // pred_check
          %p144 = pneg %p37
        $region26: #{tpu_custom_call.1} parent=23 // pred_check_branch
          %146 = sbr.rel (%p144) target = $region28
        $region27: #{tpu_custom_call.1} parent=23 // pred_region
          %s147 = sand.u32 %s27, 1
          %s148 = scalar_lea.sflag [#allocation4], %s147
          %s149 = sand.u32 %s27, 1
          %s150 = smul.addr %s149, 4
          %s151 = scalar_lea.vmem [#allocation3], %s150
          %s153 = ssub.s32 64, 64
          %154 = vsyncadd %s148, %s153
          %s155 = smul.addr %s17, 64
          %s156 = scalar_lea.hbm %s0, %s155
          %s158 = sshll.u32 %s151, 4
          %s159 = int_to_ptr.vmem [resolvable:$true] %s158
          %161 = dma.hbm_to_vmem [thread:$0]  %s156, 64, %s159, %s148
        $region28: #{tpu_custom_call.1} parent=23 // pred_fallthru
          _
      $region24: #{tpu_custom_call.1} parent=5 // pred_fallthru
        _
      %p162 = scmp.le.s32.totalorder 1, %s17
      %p163 = scmp.lt.s32.totalorder %s17, 3
      %p164 = pnand %p162, %p163
      %p165 = pneg %p164
      // Predicated region
      $region29: #{tpu_custom_call.1} parent=5 // pred_check
        _
      $region30: #{tpu_custom_call.1} parent=5 // pred_check_branch
        %167 = sbr.rel (%p164) target = $region32
      $region31: #{tpu_custom_call.1} parent=5 // pred_region
        %s168 = ssub.s32 %s17, 1
        %s169 = sand.u32 %s30, 1
        %s170 = scalar_lea.sflag [#allocation4], %s169
        %s171 = sand.u32 %s30, 1
        %s172 = smul.addr %s171, 4
        %s173 = scalar_lea.vmem [#allocation3], %s172
        // Predicated region
        $region33: #{tpu_custom_call.1} parent=31 // pred_check
          %p174 = pneg %p43
        $region34: #{tpu_custom_call.1} parent=31 // pred_check_branch
          %176 = sbr.rel (%p174) target = $region36
        $region35: #{tpu_custom_call.1} parent=31 // pred_region
          %177 = dma.done %s170, 64
        $region36: #{tpu_custom_call.1} parent=31 // pred_fallthru
          _
        // Predicated region
        $region37: #{tpu_custom_call.1} parent=31 // pred_check
          %p178 = pneg %p64
        $region38: #{tpu_custom_call.1} parent=31 // pred_check_branch
          %180 = sbr.rel (%p178) target = $region40
        $region39: #{tpu_custom_call.1} parent=31 // pred_region
          %181 = dma.done [#allocation6], 16
        $region40: #{tpu_custom_call.1} parent=31 // pred_fallthru
          _
        %182 = sfence
        %s183 = sand.u32 %s30, 1
        %s184 = scalar_lea.sflag [#allocation4], %s183
        %s185 = sand.u32 %s30, 1
        %s186 = smul.addr %s185, 4
        %s187 = scalar_lea.vmem [#allocation3], %s186
        %p188 = pneg %p43
        %p189 = pneg %p40
        %p190 = pneg %p64
        %p191 = pneg %p61
        %p192 = pneg %p85
        %p193 = pneg %p82
        %p194 = pneg %p111
        %p195 = pneg %p108
        %s196 = sand.u32 %s98, 1
        %s197 = scalar_lea.sflag [#allocation5], %s196
        %s198 = sand.u32 %s98, 1
        %s199 = scalar_lea.vmem [#allocation8], %s198
        %s200 = sld [smem:[#allocation2]]
        %v201 = vstv %s200
        %v202 = vadd.f32 %v201, 0.0
        %s203 = sld [smem:[#allocation7]]
        %v204 = vld [vmem:[%s173] sm:$0x1]
        %v205 = vstv %s203
        %v206 = vmul.f32 %v205, %v204
        %v207 = vadd.f32 %v202, %v206
        %s208 = sld [smem:[#allocation7 + $0x1]]
        %v209 = vld [vmem:[%s173 + $0x1] sm:$0x1]
        %v210 = vstv %s208
        %v211 = vmul.f32 %v210, %v209
        %v212 = vadd.f32 %v207, %v211
        %s213 = sld [smem:[#allocation7 + $0x2]]
        %v214 = vld [vmem:[%s173 + $0x2] sm:$0x1]
        %v215 = vstv %s213
        %v216 = vmul.f32 %v215, %v214
        %v217 = vadd.f32 %v212, %v216
        %218 = vst [vmem:[%s199] sm:$0x1] %v217
        %s219 = sand.u32 %s98, 1
        %s220 = scalar_lea.sflag [#allocation5], %s219
        %s221 = sand.u32 %s98, 1
        %s222 = scalar_lea.vmem [#allocation8], %s221
        // Predicated region
        $region41: #{tpu_custom_call.1} parent=31 // pred_check
          %p223 = pneg %p108
        $region42: #{tpu_custom_call.1} parent=31 // pred_check_branch
          %225 = sbr.rel (%p223) target = $region44
        $region43: #{tpu_custom_call.1} parent=31 // pred_region
          %s227 = ssub.s32 16, 16
          %228 = vsyncadd %s220, %s227
          %s229 = smul.addr %s22, 16
          %s230 = scalar_lea.hbm %s3, %s229
          %s232 = sshll.u32 %s222, 4
          %s233 = int_to_ptr.vmem [resolvable:$true] %s232
          %235 = dma.vmem_to_hbm [thread:$0]  %s233, 16, %s230, %s220
        $region44: #{tpu_custom_call.1} parent=31 // pred_fallthru
          _
      $region32: #{tpu_custom_call.1} parent=5 // pred_fallthru
        _
      %p236 = scmp.le.s32.totalorder 2, %s17
      // Predicated region
      $region45: #{tpu_custom_call.1} parent=5 // pred_check
        %p237 = pneg %p236
      $region46: #{tpu_custom_call.1} parent=5 // pred_check_branch
        %239 = sbr.rel (%p237) target = $region48
      $region47: #{tpu_custom_call.1} parent=5 // pred_region
        %s240 = ssub.s32 %s17, 2
        // Predicated region
        $region49: #{tpu_custom_call.1} parent=47 // pred_check
          %p241 = pneg %p114
        $region50: #{tpu_custom_call.1} parent=47 // pred_check_branch
          %243 = sbr.rel (%p241) target = $region52
        $region51: #{tpu_custom_call.1} parent=47 // pred_region
          %s244 = sand.u32 %s99, 1
          %s245 = scalar_lea.sflag [#allocation5], %s244
          %s246 = sand.u32 %s99, 1
          %s247 = scalar_lea.vmem [#allocation8], %s246
          %248 = dma.done %s245, 16
        $region52: #{tpu_custom_call.1} parent=47 // pred_fallthru
          _
      $region48: #{tpu_custom_call.1} parent=5 // pred_fallthru
        _
    $region6: #{tpu_custom_call.1} parent=1 // loop_footer
      %s21 = sadd.s32 1, %s17
    $region7: #{tpu_custom_call.1} parent=1 // loop_footer_branch
      %16 = sbr.rel target = $region3
    $region8: #{tpu_custom_call.1} parent=1 // loop_exit
      _
    %249 = vsyncpa [#allocation4], 1
    %s250 = scalar_lea.sflag [#allocation4], 1
    %251 = vsyncpa %s250, 1
    %252 = vsyncpa [#allocation5], 1
    %s253 = scalar_lea.sflag [#allocation5], 1
    %254 = vsyncpa %s253, 1
    %255 = vsyncpa [#allocation6], 1
    %s256 = scalar_lea.sflag [#allocation6], 1
    %257 = vsyncpa %s256, 1

</llo_original>
